<compile_context>
chip_gen: v7x
topology: tpu7x:2x2x1
jax: 0.10.0
libtpu: 0.0.40
codegen_flags: <defaults>
</compile_context>

<pallas_src>
import functools

import jax
import jax.numpy as jnp
from jax import lax
from jax.experimental import pallas as pl
from jax.experimental.pallas import tpu as pltpu

BN_EPS = 1e-5
LANE = 128
VMEM_LIMIT = 32 * 1024 * 1024  # explicit scoped-VMEM budget (safe on v5e/v6e/v7x)


def _round_up(x, m):
    return ((x + m - 1) // m) * m


# ---------------------------------------------------------------------------
# Pass 1: batch statistics of h = x @ w1 (no bias), accumulated over N-tiles.
# ---------------------------------------------------------------------------
def _stats_kernel(x_ref, w1_ref, stats_ref):
    @pl.when(pl.program_id(0) == 0)
    def _():
        stats_ref[...] = jnp.zeros_like(stats_ref)

    h = jnp.dot(x_ref[...].astype(jnp.bfloat16), w1_ref[...],
                preferred_element_type=jnp.float32)           # [TM, C_pad] f32
    s = jnp.sum(h, axis=0, keepdims=True)                     # [1, C_pad]
    ss = jnp.sum(h * h, axis=0, keepdims=True)                # [1, C_pad]
    stats_ref[...] = stats_ref[...] + jnp.concatenate([s, ss], axis=0)


# ---------------------------------------------------------------------------
# Pass 2: per-tile fc1 -> folded BN (scale/shift) -> ReLU -> fc2 + b2 -> ReLU.
# params_ref rows: 0 = scale, 1 = shift, 2 = fc2 bias   (all [1, C_pad] f32).
# ---------------------------------------------------------------------------
def _fused_kernel(x_ref, w1_ref, w2_ref, params_ref, o_ref):
    h = jnp.dot(x_ref[...].astype(jnp.bfloat16), w1_ref[...],
                preferred_element_type=jnp.float32)           # [TM, C_pad] f32

    scale = params_ref[0:1, :]
    shift = params_ref[1:2, :]
    b2 = params_ref[2:3, :]

    h = jnp.maximum(h * scale + shift, 0.0)                   # BN + ReLU, fused

    y = jnp.dot(h.astype(jnp.bfloat16), w2_ref[...],
                preferred_element_type=jnp.float32) + b2
    o_ref[...] = jnp.maximum(y, 0.0)


# ---------------------------------------------------------------------------
# One-time parameter preparation (hoisted out of the forward path).
# ---------------------------------------------------------------------------
def prepare_nn_params(w1, b1, gamma, beta, w2, b2):
    """Pad to lane width, cast weights to bf16, pack per-channel params.

    b1 is accepted for parity with nn.Linear but dropped: a bias added before
    training-mode BatchNorm is removed exactly by the mean subtraction.
    (NOT valid for an eval-mode BN using running statistics.)
    """
    del b1
    c_in, c_out = w1.shape
    c_pad = _round_up(max(c_out, LANE), LANE)

    w1p = (jnp.zeros((c_in, c_pad), jnp.float32)
           .at[:, :c_out].set(w1).astype(jnp.bfloat16))
    w2p = (jnp.zeros((c_pad, c_pad), jnp.float32)
           .at[:c_out, :c_out].set(w2).astype(jnp.bfloat16))
    gamma_p = jnp.zeros((c_pad,), jnp.float32).at[:c_out].set(gamma.reshape(-1))
    beta_p = jnp.zeros((c_pad,), jnp.float32).at[:c_out].set(beta.reshape(-1))
    b2_p = jnp.zeros((c_pad,), jnp.float32).at[:c_out].set(b2.reshape(-1))
    return (w1p, w2p, gamma_p, beta_p, b2_p), c_out


# ---------------------------------------------------------------------------
# Forward pass.
# ---------------------------------------------------------------------------
@functools.partial(jax.jit, static_argnames=("c_out", "tile_m"))
def nn_forward(x, w1p, w2p, gamma_p, beta_p, b2_p, *, c_out, tile_m=256):
    """x: [N, C_in] f32 -> [N, C_out] f32  (training-mode BatchNorm)."""
    n, c_in = x.shape
    c_pad = w1p.shape[1]

    n_pad = _round_up(max(n, tile_m), tile_m)
    if n_pad != n:
        # Zero rows contribute nothing to the stats (no fc1 bias) and are
        # sliced off at the end.
        x = jnp.pad(x, ((0, n_pad - n), (0, 0)))
    n_tiles = n_pad // tile_m

    # --- pass 1: per-channel sum / sum-of-squares ------------------------
    stats = pl.pallas_call(
        _stats_kernel,
        out_shape=jax.ShapeDtypeStruct((2, c_pad), jnp.float32),
        grid=(n_tiles,),
        in_specs=[
            pl.BlockSpec((tile_m, c_in), lambda i: (i, 0)),
            pl.BlockSpec((c_in, c_pad), lambda i: (0, 0)),
        ],
        out_specs=pl.BlockSpec((2, c_pad), lambda i: (0, 0)),
        compiler_params=pltpu.CompilerParams(
            dimension_semantics=("arbitrary",),
            vmem_limit_bytes=VMEM_LIMIT),
        cost_estimate=pl.CostEstimate(
            flops=2 * n_pad * c_in * c_pad + 3 * n_pad * c_pad,
            transcendentals=0,
            bytes_accessed=4 * n_pad * c_in + 2 * c_in * c_pad + 8 * c_pad),
    )(x, w1p)

    # --- fold BN normalize + affine into scale/shift (done once) ---------
    inv_n = jnp.float32(1.0 / n)                       # real row count, not n_pad
    mean = stats[0] * inv_n
    var = jnp.maximum(stats[1] * inv_n - mean * mean, 0.0)
    scale = gamma_p * lax.rsqrt(var + BN_EPS)
    shift = beta_p - mean * scale
    params2 = jnp.stack([scale, shift, b2_p], axis=0)  # [3, c_pad]

    # --- pass 2: fc1 -> BN(scale/shift) -> ReLU -> fc2 -> ReLU ------------
    out = pl.pallas_call(
        _fused_kernel,
        out_shape=jax.ShapeDtypeStruct((n_pad, c_pad), jnp.float32),
        grid=(n_tiles,),
        in_specs=[
            pl.BlockSpec((tile_m, c_in), lambda i: (i, 0)),
            pl.BlockSpec((c_in, c_pad), lambda i: (0, 0)),
            pl.BlockSpec((c_pad, c_pad), lambda i: (0, 0)),
            pl.BlockSpec((3, c_pad), lambda i: (0, 0)),
        ],
        out_specs=pl.BlockSpec((tile_m, c_pad), lambda i: (i, 0)),
        compiler_params=pltpu.CompilerParams(
            dimension_semantics=("parallel",),
            vmem_limit_bytes=VMEM_LIMIT),
        cost_estimate=pl.CostEstimate(
            flops=2 * n_pad * c_pad * (c_in + c_pad) + 4 * n_pad * c_pad,
            transcendentals=0,
            bytes_accessed=(4 * n_pad * c_in + 2 * c_in * c_pad
                            + 2 * c_pad * c_pad + 12 * c_pad
                            + 4 * n_pad * c_pad)),
    )(x, w1p, w2p, params2)

    # TODO(synk): a consumer that can take the lane-dense padded [n_pad, c_pad]
    # buffer directly would avoid this extra slice copy when c_out < 128.
    return out[:n, :c_out]


# ---------------------------------------------------------------------------
# Pure-JAX reference, faithful to the PyTorch module (f32 everywhere,
# fc1 bias included, BatchNorm1d in training mode with biased variance).
# ---------------------------------------------------------------------------
def reference_forward(x, w1, b1, gamma, beta, w2, b2):
    h = x @ w1 + b1
    mean = jnp.mean(h, axis=0, keepdims=True)
    var = jnp.mean(jnp.square(h - mean), axis=0, keepdims=True)
    h = (h - mean) / jnp.sqrt(var + BN_EPS) * gamma + beta
    h = jnp.maximum(h, 0.0)
    y = h @ w2 + b2
    return jnp.maximum(y, 0.0)


if __name__ == "__main__":
    # NN is applied to 2-D node-feature matrices inside HatNet's GINConv.
    # TODO(synk): the 3-D dense-batch path of NN.forward (permute around BN)
    # is not exercised here; the per-feature BN math is identical but the
    # reduction would have to run over B*N rows.
    N, C_IN, C_OUT = 8, 16, 32

    key = jax.random.PRNGKey(0)
    kx, k1, kb1, k2, kb2, kg, kb = jax.random.split(key, 7)

    bound1 = 1.0 / (C_IN ** 0.5)
    bound2 = 1.0 / (C_OUT ** 0.5)
    x = jax.random.normal(kx, (N, C_IN), dtype=jnp.float32)
    w1 = jax.random.uniform(k1, (C_IN, C_OUT), jnp.float32, -bound1, bound1)
    b1 = jax.random.uniform(kb1, (1, C_OUT), jnp.float32, -bound1, bound1)
    w2 = jax.random.uniform(k2, (C_OUT, C_OUT), jnp.float32, -bound2, bound2)
    b2 = jax.random.uniform(kb2, (1, C_OUT), jnp.float32, -bound2, bound2)
    gamma = jnp.ones((1, C_OUT), jnp.float32) + 0.01 * jax.random.normal(kg, (1, C_OUT))
    beta = 0.01 * jax.random.normal(kb, (1, C_OUT), dtype=jnp.float32)

    # One-time parameter preparation (padding + bf16 cast), hoisted out of
    # the forward path.
    (w1p, w2p, gamma_p, beta_p, b2_p), c_out = prepare_nn_params(
        w1, b1, gamma, beta, w2, b2)

    out = nn_forward(x, w1p, w2p, gamma_p, beta_p, b2_p, c_out=c_out)
    out = jax.block_until_ready(out)

    ref = reference_forward(x, w1, b1, gamma, beta, w2, b2)
    assert out.shape == (N, C_OUT)
    # bf16 MXU inputs (f32 accumulation) vs. the pure-f32 reference: loose
    # tolerance; differences are bf16-rounding level only.
    max_diff = float(jnp.max(jnp.abs(out - ref)))
    assert jnp.allclose(out, ref, atol=5e-2, rtol=5e-2), max_diff

    print("KERNEL_OK")
</pallas_src>

<mosaic_0001>
module attributes {stable_mosaic.version = 11 : i64} {
  func.func @_stats_kernel(%arg0: i32, %arg1: memref<256x16xf32, #tpu.memory_space<vmem>>, %arg2: memref<16x128xbf16, #tpu.memory_space<vmem>>, %arg3: memref<2x128xf32, #tpu.memory_space<vmem>>) attributes {dimension_semantics = [#tpu.dimension_semantics<arbitrary>], iteration_bounds = array<i64: 1>, scalar_prefetch = 0 : i64, scratch_operands = 0 : i64, tpu.core_type = #tpu.core_type<tc>, window_params = [{transform_indices = @transform_0, window_bounds = array<i64: 256, 16>}, {pipeline_mode = #tpu.pipeline_mode<synchronous>, transform_indices = @transform_1, window_bounds = array<i64: 16, 128>}, {pipeline_mode = #tpu.pipeline_mode<synchronous>, transform_indices = @transform_2, window_bounds = array<i64: 2, 128>}]} {
    %c0_i32 = arith.constant 0 : i32
    %0 = arith.cmpi eq, %arg0, %c0_i32 : i32
    %1 = arith.extui %0 : i1 to i32
    %c0_i32_0 = arith.constant 0 : i32
    %2 = arith.cmpi ne, %1, %c0_i32_0 : i32
    scf.if %2 {
      %cst_10 = arith.constant 0.000000e+00 : f32
      %16 = vector.broadcast %cst_10 : f32 to vector<2x128xf32>
      %c0_11 = arith.constant 0 : index
      %c0_12 = arith.constant 0 : index
      %17 = vector.load %arg3[%c0_11, %c0_12] : memref<2x128xf32, #tpu.memory_space<vmem>>, vector<2x128xf32>
      tpu.vector_store %arg3[%c0_11, %c0_12], %16 {strides = array<i32>} : memref<2x128xf32, #tpu.memory_space<vmem>>, vector<2x128xf32>,
    } else {
    }
    %c0 = arith.constant 0 : index
    %c0_1 = arith.constant 0 : index
    %3 = vector.load %arg1[%c0, %c0_1] : memref<256x16xf32, #tpu.memory_space<vmem>>, vector<256x16xf32>
    %4 = arith.truncf %3 : vector<256x16xf32> to vector<256x16xbf16>
    %c0_2 = arith.constant 0 : index
    %c0_3 = arith.constant 0 : index
    %5 = vector.load %arg2[%c0_2, %c0_3] : memref<16x128xbf16, #tpu.memory_space<vmem>>, vector<16x128xbf16>
    %cst = arith.constant dense<0.000000e+00> : vector<256x128xf32>
    %6 = tpu.matmul %4, %5, %cst {dimension_numbers = #tpu.dot_dimension_numbers<[1], [0], [0], [1], [0, 0, 1, 1], [], []>} : vector<256x16xbf16>, vector<16x128xbf16>, vector<256x128xf32> -> vector<256x128xf32>
    %cst_4 = arith.constant dense<0.000000e+00> : vector<128xf32>
    %7 = vector.multi_reduction <add>, %6, %cst_4 [0] : vector<256x128xf32> to vector<128xf32>
    %8 = vector.shape_cast %7 : vector<128xf32> to vector<1x128xf32>
    %9 = arith.mulf %6, %6 : vector<256x128xf32>
    %cst_5 = arith.constant dense<0.000000e+00> : vector<128xf32>
    %10 = vector.multi_reduction <add>, %9, %cst_5 [0] : vector<256x128xf32> to vector<128xf32>
    %11 = vector.shape_cast %10 : vector<128xf32> to vector<1x128xf32>
    %c0_6 = arith.constant 0 : index
    %c0_7 = arith.constant 0 : index
    %12 = vector.load %arg3[%c0_6, %c0_7] : memref<2x128xf32, #tpu.memory_space<vmem>>, vector<2x128xf32>
    %13 = tpu.concatenate %8, %11 in 0 : vector<1x128xf32>, vector<1x128xf32> -> vector<2x128xf32>
    %14 = arith.addf %12, %13 : vector<2x128xf32>
    %c0_8 = arith.constant 0 : index
    %c0_9 = arith.constant 0 : index
    %15 = vector.load %arg3[%c0_8, %c0_9] : memref<2x128xf32, #tpu.memory_space<vmem>>, vector<2x128xf32>
    tpu.vector_store %arg3[%c0_8, %c0_9], %14 {strides = array<i32>} : memref<2x128xf32, #tpu.memory_space<vmem>>, vector<2x128xf32>,
    return
  }
  func.func @transform_0(%arg0: i32) -> (i32, i32) {
    %c0_i32 = arith.constant 0 : i32
    %c0_i32_0 = arith.constant 0 : i32
    return %arg0, %c0_i32 : i32, i32
  }
  func.func @transform_1(%arg0: i32) -> (i32, i32) {
    %c0_i32 = arith.constant 0 : i32
    %c0_i32_0 = arith.constant 0 : i32
    %c0_i32_1 = arith.constant 0 : i32
    return %c0_i32, %c0_i32_0 : i32, i32
  }
  func.func @transform_2(%arg0: i32) -> (i32, i32) {
    %c0_i32 = arith.constant 0 : i32
    %c0_i32_0 = arith.constant 0 : i32
    %c0_i32_1 = arith.constant 0 : i32
    return %c0_i32, %c0_i32_0 : i32, i32
  }
}

module attributes {stable_mosaic.version = 11 : i64} {
  func.func @_fused_kernel(%arg0: i32, %arg1: memref<256x16xf32, #tpu.memory_space<vmem>>, %arg2: memref<16x128xbf16, #tpu.memory_space<vmem>>, %arg3: memref<128x128xbf16, #tpu.memory_space<vmem>>, %arg4: memref<3x128xf32, #tpu.memory_space<vmem>>, %arg5: memref<256x128xf32, #tpu.memory_space<vmem>>) attributes {dimension_semantics = [#tpu.dimension_semantics<parallel>], iteration_bounds = array<i64: 1>, scalar_prefetch = 0 : i64, scratch_operands = 0 : i64, tpu.core_type = #tpu.core_type<tc>, window_params = [{transform_indices = @transform_0, window_bounds = array<i64: 256, 16>}, {pipeline_mode = #tpu.pipeline_mode<synchronous>, transform_indices = @transform_1, window_bounds = array<i64: 16, 128>}, {pipeline_mode = #tpu.pipeline_mode<synchronous>, transform_indices = @transform_2, window_bounds = array<i64: 128, 128>}, {pipeline_mode = #tpu.pipeline_mode<synchronous>, transform_indices = @transform_3, window_bounds = array<i64: 3, 128>}, {transform_indices = @transform_4, window_bounds = array<i64: 256, 128>}]} {
    %c0 = arith.constant 0 : index
    %c0_0 = arith.constant 0 : index
    %0 = vector.load %arg1[%c0, %c0_0] : memref<256x16xf32, #tpu.memory_space<vmem>>, vector<256x16xf32>
    %1 = arith.truncf %0 : vector<256x16xf32> to vector<256x16xbf16>
    %c0_1 = arith.constant 0 : index
    %c0_2 = arith.constant 0 : index
    %2 = vector.load %arg2[%c0_1, %c0_2] : memref<16x128xbf16, #tpu.memory_space<vmem>>, vector<16x128xbf16>
    %cst = arith.constant dense<0.000000e+00> : vector<256x128xf32>
    %3 = tpu.matmul %1, %2, %cst {dimension_numbers = #tpu.dot_dimension_numbers<[1], [0], [0], [1], [0, 0, 1, 1], [], []>} : vector<256x16xbf16>, vector<16x128xbf16>, vector<256x128xf32> -> vector<256x128xf32>
    %c0_3 = arith.constant 0 : index
    %c0_4 = arith.constant 0 : index
    %4 = vector.load %arg4[%c0_3, %c0_4] : memref<3x128xf32, #tpu.memory_space<vmem>>, vector<1x128xf32>
    %c1 = arith.constant 1 : index
    %c0_5 = arith.constant 0 : index
    %5 = vector.load %arg4[%c1, %c0_5] : memref<3x128xf32, #tpu.memory_space<vmem>>, vector<1x128xf32>
    %c2 = arith.constant 2 : index
    %c0_6 = arith.constant 0 : index
    %6 = vector.load %arg4[%c2, %c0_6] : memref<3x128xf32, #tpu.memory_space<vmem>>, vector<1x128xf32>
    %7 = vector.broadcast %4 : vector<1x128xf32> to vector<256x128xf32>
    %8 = arith.mulf %3, %7 : vector<256x128xf32>
    %9 = vector.broadcast %5 : vector<1x128xf32> to vector<256x128xf32>
    %10 = arith.addf %8, %9 : vector<256x128xf32>
    %cst_7 = arith.constant 0.000000e+00 : f32
    %11 = vector.broadcast %cst_7 : f32 to vector<256x128xf32>
    %12 = arith.maximumf %10, %11 : vector<256x128xf32>
    %13 = arith.truncf %12 : vector<256x128xf32> to vector<256x128xbf16>
    %c0_8 = arith.constant 0 : index
    %c0_9 = arith.constant 0 : index
    %14 = vector.load %arg3[%c0_8, %c0_9] : memref<128x128xbf16, #tpu.memory_space<vmem>>, vector<128x128xbf16>
    %cst_10 = arith.constant dense<0.000000e+00> : vector<256x128xf32>
    %15 = tpu.matmul %13, %14, %cst_10 {dimension_numbers = #tpu.dot_dimension_numbers<[1], [0], [0], [1], [0, 0, 1, 1], [], []>} : vector<256x128xbf16>, vector<128x128xbf16>, vector<256x128xf32> -> vector<256x128xf32>
    %16 = vector.broadcast %6 : vector<1x128xf32> to vector<256x128xf32>
    %17 = arith.addf %15, %16 : vector<256x128xf32>
    %cst_11 = arith.constant 0.000000e+00 : f32
    %18 = vector.broadcast %cst_11 : f32 to vector<256x128xf32>
    %19 = arith.maximumf %17, %18 : vector<256x128xf32>
    %c0_12 = arith.constant 0 : index
    %c0_13 = arith.constant 0 : index
    %20 = vector.load %arg5[%c0_12, %c0_13] : memref<256x128xf32, #tpu.memory_space<vmem>>, vector<256x128xf32>
    tpu.vector_store %arg5[%c0_12, %c0_13], %19 {strides = array<i32>} : memref<256x128xf32, #tpu.memory_space<vmem>>, vector<256x128xf32>,
    return
  }
  func.func @transform_0(%arg0: i32) -> (i32, i32) {
    %c0_i32 = arith.constant 0 : i32
    %c0_i32_0 = arith.constant 0 : i32
    return %arg0, %c0_i32 : i32, i32
  }
  func.func @transform_1(%arg0: i32) -> (i32, i32) {
    %c0_i32 = arith.constant 0 : i32
    %c0_i32_0 = arith.constant 0 : i32
    %c0_i32_1 = arith.constant 0 : i32
    return %c0_i32, %c0_i32_0 : i32, i32
  }
  func.func @transform_2(%arg0: i32) -> (i32, i32) {
    %c0_i32 = arith.constant 0 : i32
    %c0_i32_0 = arith.constant 0 : i32
    %c0_i32_1 = arith.constant 0 : i32
    return %c0_i32, %c0_i32_0 : i32, i32
  }
  func.func @transform_3(%arg0: i32) -> (i32, i32) {
    %c0_i32 = arith.constant 0 : i32
    %c0_i32_0 = arith.constant 0 : i32
    %c0_i32_1 = arith.constant 0 : i32
    return %c0_i32, %c0_i32_0 : i32, i32
  }
  func.func @transform_4(%arg0: i32) -> (i32, i32) {
    %c0_i32 = arith.constant 0 : i32
    %c0_i32_0 = arith.constant 0 : i32
    return %arg0, %c0_i32 : i32, i32
  }
}

</mosaic_0001>

<llo_original>
// kernel: nn_forward.2
$region0: #{nn_forward.2}
  #allocation0 [shape = 'u32[]', space=smem, size = 0x4, offset = 0x4, fixed_abs, tag = 'smem constant byte address 0x4 - core index']
  #allocation1 [shape = 'u32[144,128]{1,0:T(1,128)}', space=vmem, size = 0x12000, scoped, tag = 'internal scratch']
  %s0 = inlined_call_operand.vmem [shape: f32[256,16], index: 0, kind: input, shape index: {}]
  %s1 = inlined_call_operand.vmem [shape: bf16[16,128], index: 1, kind: input, shape index: {}]
  %s2 = inlined_call_operand.vmem [shape: f32[2,128], index: 2, kind: output, shape index: {}]
  %s3 = sld [smem:[#allocation0]]
  $region22: #{nn_forward.2} parent=0
    _
  %s5 = ssub.s32 1, %s3
  %s6 = scalar_select 0, %s5, %s3
  // Predicated region
  $region2: #{nn_forward.2} parent=0 // pred_check
    _
  $region3: #{nn_forward.2} parent=0 // pred_check_branch
    %8 = sbr.rel (0) target = $region5
  $region4: #{nn_forward.2} parent=0 // pred_region
    _
  $region5: #{nn_forward.2} parent=0 // pred_fallthru
    _
  // Predicated region
  $region6: #{nn_forward.2} parent=0 // pred_check
    _
  $region7: #{nn_forward.2} parent=0 // pred_check_branch
    %10 = sbr.rel (0) target = $region9
  $region8: #{nn_forward.2} parent=0 // pred_region
    _
  $region9: #{nn_forward.2} parent=0 // pred_fallthru
    _
  %p12 = scmp.eq.s32.totalorder 0, 0
  // Predicated region
  $region10: #{nn_forward.2} parent=0 // pred_check
    %p13 = pneg %p12
  $region11: #{nn_forward.2} parent=0 // pred_check_branch
    %15 = sbr.rel (%p13) target = $region13
  $region12: #{nn_forward.2} parent=0 // pred_region
    %16 = vst [vmem:[%s2] sm:$0x3] 0.0
  $region13: #{nn_forward.2} parent=0 // pred_fallthru
    _
  %v17 = vld [vmem:[%s0] sm:$0xff]
  %v18 = vld [vmem:[%s0 + $0x8] sm:$0xff]
  %v19 = vld [vmem:[%s0 + $0x10] sm:$0xff]
  %v20 = vld [vmem:[%s0 + $0x18] sm:$0xff]
  %v21 = vld [vmem:[%s0 + $0x20] sm:$0xff]
  %v22 = vld [vmem:[%s0 + $0x28] sm:$0xff]
  %v23 = vld [vmem:[%s0 + $0x30] sm:$0xff]
  %v24 = vld [vmem:[%s0 + $0x38] sm:$0xff]
  %v25 = vld [vmem:[%s0 + $0x40] sm:$0xff]
  %v26 = vld [vmem:[%s0 + $0x48] sm:$0xff]
  %v27 = vld [vmem:[%s0 + $0x50] sm:$0xff]
  %v28 = vld [vmem:[%s0 + $0x58] sm:$0xff]
  %v29 = vld [vmem:[%s0 + $0x60] sm:$0xff]
  %v30 = vld [vmem:[%s0 + $0x68] sm:$0xff]
  %v31 = vld [vmem:[%s0 + $0x70] sm:$0xff]
  %v32 = vld [vmem:[%s0 + $0x78] sm:$0xff]
  %v33 = vld [vmem:[%s0 + $0x80] sm:$0xff]
  %v34 = vld [vmem:[%s0 + $0x88] sm:$0xff]
  %v35 = vld [vmem:[%s0 + $0x90] sm:$0xff]
  %v36 = vld [vmem:[%s0 + $0x98] sm:$0xff]
  %v37 = vld [vmem:[%s0 + $0xa0] sm:$0xff]
  %v38 = vld [vmem:[%s0 + $0xa8] sm:$0xff]
  %v39 = vld [vmem:[%s0 + $0xb0] sm:$0xff]
  %v40 = vld [vmem:[%s0 + $0xb8] sm:$0xff]
  %v41 = vld [vmem:[%s0 + $0xc0] sm:$0xff]
  %v42 = vld [vmem:[%s0 + $0xc8] sm:$0xff]
  %v43 = vld [vmem:[%s0 + $0xd0] sm:$0xff]
  %v44 = vld [vmem:[%s0 + $0xd8] sm:$0xff]
  %v45 = vld [vmem:[%s0 + $0xe0] sm:$0xff]
  %v46 = vld [vmem:[%s0 + $0xe8] sm:$0xff]
  %v47 = vld [vmem:[%s0 + $0xf0] sm:$0xff]
  %v48 = vld [vmem:[%s0 + $0xf8] sm:$0xff]
  %v49 = vpack.c.bf16 %v18, %v17
  %v50 = vpack.c.bf16 %v20, %v19
  %v51 = vpack.c.bf16 %v22, %v21
  %v52 = vpack.c.bf16 %v24, %v23
  %v53 = vpack.c.bf16 %v26, %v25
  %v54 = vpack.c.bf16 %v28, %v27
  %v55 = vpack.c.bf16 %v30, %v29
  %v56 = vpack.c.bf16 %v32, %v31
  %v57 = vpack.c.bf16 %v34, %v33
  %v58 = vpack.c.bf16 %v36, %v35
  %v59 = vpack.c.bf16 %v38, %v37
  %v60 = vpack.c.bf16 %v40, %v39
  %v61 = vpack.c.bf16 %v42, %v41
  %v62 = vpack.c.bf16 %v44, %v43
  %v63 = vpack.c.bf16 %v46, %v45
  %v64 = vpack.c.bf16 %v48, %v47
  %v65 = vld [vmem:[%s1] sm:$0xf]
  %v66 = vld [vmem:[%s1 + $0x4] sm:$0xf]
  %v69 = vunpack.c.l.b16 %v65
  %v70 = vunpack.c.l.b16 %v66
  %v71 = vpack.c.b16 %v70, %v69
  %vm73 = vcmask 130048
  %v75 = vsel %vm73, %v49, 0
  %v78 = vsel %vm73, %v50, 0
  %v81 = vsel %vm73, %v51, 0
  %v84 = vsel %vm73, %v52, 0
  %v87 = vsel %vm73, %v53, 0
  %v90 = vsel %vm73, %v54, 0
  %v93 = vsel %vm73, %v55, 0
  %v96 = vsel %vm73, %v56, 0
  %v99 = vsel %vm73, %v57, 0
  %v102 = vsel %vm73, %v58, 0
  %v105 = vsel %vm73, %v59, 0
  %v108 = vsel %vm73, %v60, 0
  %v111 = vsel %vm73, %v61, 0
  %v114 = vsel %vm73, %v62, 0
  %v117 = vsel %vm73, %v63, 0
  %v120 = vsel %vm73, %v64, 0
  %122 = vmatprep.subr.bf16.mxu0 0
  %123 = vmatpush1.bf16.msra.mxu0 %v71
  %124 = vmatprep.subr.bf16.mxu0 0
  %125 = vmatpush1.bf16.msra.mxu0 0
  %126 = vmatprep.subr.bf16.mxu0 0
  %127 = vmatpush1.bf16.msra.mxu0 0
  %128 = vmatprep.subr.bf16.mxu0 0
  %129 = vmatpush1.bf16.msra.mxu0 0
  %130 = vmatprep.subr.bf16.mxu0 0
  %131 = vmatpush1.bf16.msra.mxu0 0
  %132 = vmatprep.subr.bf16.mxu0 0
  %133 = vmatpush1.bf16.msra.mxu0 0
  %134 = vmatprep.subr.bf16.mxu0 0
  %135 = vmatpush1.bf16.msra.mxu0 0
  %136 = vmatprep.subr.bf16.mxu0 0
  %137 = vmatpush1.bf16.msra.mxu0 0
  %138 = vmatprep.subr.bf16.mxu0 0
  %139 = vmatpush1.bf16.msra.mxu0 0
  %140 = vmatprep.subr.bf16.mxu0 0
  %141 = vmatpush1.bf16.msra.mxu0 0
  %142 = vmatprep.subr.bf16.mxu0 0
  %143 = vmatpush1.bf16.msra.mxu0 0
  %144 = vmatprep.subr.bf16.mxu0 0
  %145 = vmatpush1.bf16.msra.mxu0 0
  %146 = vmatprep.subr.bf16.mxu0 0
  %147 = vmatpush1.bf16.msra.mxu0 0
  %148 = vmatprep.subr.bf16.mxu0 0
  %149 = vmatpush1.bf16.msra.mxu0 0
  %150 = vmatprep.subr.bf16.mxu0 0
  %151 = vmatpush1.bf16.msra.mxu0 0
  %152 = vmatprep.subr.bf16.mxu0 0
  %153 = vmatpush1.bf16.msra.mxu0 0
  %154 = vmatprep.mubr.bf16.mxu0 0
  %155 = vmatmul.mubr.bf16.gmra.mrb[0].mxu0 %v75
  %v156 = vpop.f32.mrb[0].mxu0
  %v157 = vadd.f32 0.0, %v156
  %v158 = vpop.f32.mrb[0].mxu0
  %v159 = vpop.f32.mrb[0].mxu0
  %v160 = vadd.f32 0.0, %v159
  %v161 = vpop.f32.mrb[0].mxu0
  %162 = vmatprep.mubr.bf16.mxu0 0
  %163 = vmatmul.mubr.bf16.gmra.mrb[0].mxu0 %v78
  %v164 = vpop.f32.mrb[0].mxu0
  %v165 = vadd.f32 0.0, %v164
  %v166 = vpop.f32.mrb[0].mxu0
  %v167 = vpop.f32.mrb[0].mxu0
  %v168 = vadd.f32 0.0, %v167
  %v169 = vpop.f32.mrb[0].mxu0
  %170 = vmatprep.mubr.bf16.mxu0 0
  %171 = vmatmul.mubr.bf16.gmra.mrb[0].mxu0 %v81
  %v172 = vpop.f32.mrb[0].mxu0
  %v173 = vadd.f32 0.0, %v172
  %v174 = vpop.f32.mrb[0].mxu0
  %v175 = vpop.f32.mrb[0].mxu0
  %v176 = vadd.f32 0.0, %v175
  %v177 = vpop.f32.mrb[0].mxu0
  %178 = vmatprep.mubr.bf16.mxu0 0
  %179 = vmatmul.mubr.bf16.gmra.mrb[0].mxu0 %v84
  %v180 = vpop.f32.mrb[0].mxu0
  %v181 = vadd.f32 0.0, %v180
  %v182 = vpop.f32.mrb[0].mxu0
  %v183 = vpop.f32.mrb[0].mxu0
  %v184 = vadd.f32 0.0, %v183
  %v185 = vpop.f32.mrb[0].mxu0
  %186 = vmatprep.mubr.bf16.mxu0 0
  %187 = vmatmul.mubr.bf16.gmra.mrb[0].mxu0 %v87
  %v188 = vpop.f32.mrb[0].mxu0
  %v189 = vadd.f32 0.0, %v188
  %v190 = vpop.f32.mrb[0].mxu0
  %v191 = vpop.f32.mrb[0].mxu0
  %v192 = vadd.f32 0.0, %v191
  %v193 = vpop.f32.mrb[0].mxu0
  %194 = vmatprep.mubr.bf16.mxu0 0
  %195 = vmatmul.mubr.bf16.gmra.mrb[0].mxu0 %v90
  %v196 = vpop.f32.mrb[0].mxu0
  %v197 = vadd.f32 0.0, %v196
  %v198 = vpop.f32.mrb[0].mxu0
  %v199 = vpop.f32.mrb[0].mxu0
  %v200 = vadd.f32 0.0, %v199
  %v201 = vpop.f32.mrb[0].mxu0
  %202 = vmatprep.mubr.bf16.mxu0 0
  %203 = vmatmul.mubr.bf16.gmra.mrb[0].mxu0 %v93
  %v204 = vpop.f32.mrb[0].mxu0
  %v205 = vadd.f32 0.0, %v204
  %v206 = vpop.f32.mrb[0].mxu0
  %v207 = vpop.f32.mrb[0].mxu0
  %v208 = vadd.f32 0.0, %v207
  %v209 = vpop.f32.mrb[0].mxu0
  %210 = vmatprep.mubr.bf16.mxu0 0
  %211 = vmatmul.mubr.bf16.gmra.mrb[0].mxu0 %v96
  %v212 = vpop.f32.mrb[0].mxu0
  %v213 = vadd.f32 0.0, %v212
  %v214 = vpop.f32.mrb[0].mxu0
  %v215 = vpop.f32.mrb[0].mxu0
  %v216 = vadd.f32 0.0, %v215
  %v217 = vpop.f32.mrb[0].mxu0
  %218 = vmatprep.mubr.bf16.mxu0 0
  %219 = vmatmul.mubr.bf16.gmra.mrb[0].mxu0 %v99
  %v220 = vpop.f32.mrb[0].mxu0
  %v221 = vadd.f32 0.0, %v220
  %v222 = vpop.f32.mrb[0].mxu0
  %v223 = vpop.f32.mrb[0].mxu0
  %v224 = vadd.f32 0.0, %v223
  %v225 = vpop.f32.mrb[0].mxu0
  %226 = vmatprep.mubr.bf16.mxu0 0
  %227 = vmatmul.mubr.bf16.gmra.mrb[0].mxu0 %v102
  %v228 = vpop.f32.mrb[0].mxu0
  %v229 = vadd.f32 0.0, %v228
  %v230 = vpop.f32.mrb[0].mxu0
  %v231 = vpop.f32.mrb[0].mxu0
  %v232 = vadd.f32 0.0, %v231
  %v233 = vpop.f32.mrb[0].mxu0
  %234 = vmatprep.mubr.bf16.mxu0 0
  %235 = vmatmul.mubr.bf16.gmra.mrb[0].mxu0 %v105
  %v236 = vpop.f32.mrb[0].mxu0
  %v237 = vadd.f32 0.0, %v236
  %v238 = vpop.f32.mrb[0].mxu0
  %v239 = vpop.f32.mrb[0].mxu0
  %v240 = vadd.f32 0.0, %v239
  %v241 = vpop.f32.mrb[0].mxu0
  %242 = vmatprep.mubr.bf16.mxu0 0
  %243 = vmatmul.mubr.bf16.gmra.mrb[0].mxu0 %v108
  %v244 = vpop.f32.mrb[0].mxu0
  %v245 = vadd.f32 0.0, %v244
  %v246 = vpop.f32.mrb[0].mxu0
  %v247 = vpop.f32.mrb[0].mxu0
  %v248 = vadd.f32 0.0, %v247
  %v249 = vpop.f32.mrb[0].mxu0
  %250 = vmatprep.mubr.bf16.mxu0 0
  %251 = vmatmul.mubr.bf16.gmra.mrb[0].mxu0 %v111
  %v252 = vpop.f32.mrb[0].mxu0
  %v253 = vadd.f32 0.0, %v252
  %v254 = vpop.f32.mrb[0].mxu0
  %v255 = vpop.f32.mrb[0].mxu0
  %v256 = vadd.f32 0.0, %v255
  %v257 = vpop.f32.mrb[0].mxu0
  %258 = vmatprep.mubr.bf16.mxu0 0
  %259 = vmatmul.mubr.bf16.gmra.mrb[0].mxu0 %v114
  %v260 = vpop.f32.mrb[0].mxu0
  %v261 = vadd.f32 0.0, %v260
  %v262 = vpop.f32.mrb[0].mxu0
  %v263 = vpop.f32.mrb[0].mxu0
  %v264 = vadd.f32 0.0, %v263
  %v265 = vpop.f32.mrb[0].mxu0
  %266 = vmatprep.mubr.bf16.mxu0 0
  %267 = vmatmul.mubr.bf16.gmra.mrb[0].mxu0 %v117
  %v268 = vpop.f32.mrb[0].mxu0
  %v269 = vadd.f32 0.0, %v268
  %v270 = vpop.f32.mrb[0].mxu0
  %v271 = vpop.f32.mrb[0].mxu0
  %v272 = vadd.f32 0.0, %v271
  %v273 = vpop.f32.mrb[0].mxu0
  %274 = vmatprep.mubr.bf16.mxu0 0
  %275 = vmatmul.mubr.bf16.gmra.mrb[0].mxu0 %v120
  %v276 = vpop.f32.mrb[0].mxu0
  %v277 = vadd.f32 0.0, %v276
  %v278 = vpop.f32.mrb[0].mxu0
  %v279 = vpop.f32.mrb[0].mxu0
  %v280 = vadd.f32 0.0, %v279
  %v281 = vpop.f32.mrb[0].mxu0
  %282 = vdwg.mxu0
  %v283 = vadd.f32 %v157, %v160
  %v284 = vadd.f32 %v283, %v165
  %v285 = vadd.f32 %v284, %v168
  %v286 = vadd.f32 %v285, %v173
  %v287 = vadd.f32 %v286, %v176
  %v288 = vadd.f32 %v287, %v181
  %v289 = vadd.f32 %v288, %v184
  %v290 = vadd.f32 %v289, %v189
  %v291 = vadd.f32 %v290, %v192
  %v292 = vadd.f32 %v291, %v197
  %v293 = vadd.f32 %v292, %v200
  %v294 = vadd.f32 %v293, %v205
  %v295 = vadd.f32 %v294, %v208
  %v296 = vadd.f32 %v295, %v213
  %v297 = vadd.f32 %v296, %v216
  %v298 = vadd.f32 %v297, %v221
  %v299 = vadd.f32 %v298, %v224
  %v300 = vadd.f32 %v299, %v229
  %v301 = vadd.f32 %v300, %v232
  %v302 = vadd.f32 %v301, %v237
  %v303 = vadd.f32 %v302, %v240
  %v304 = vadd.f32 %v303, %v245
  %v305 = vadd.f32 %v304, %v248
  %v306 = vadd.f32 %v305, %v253
  %v307 = vadd.f32 %v306, %v256
  %v308 = vadd.f32 %v307, %v261
  %v309 = vadd.f32 %v308, %v264
  %v310 = vadd.f32 %v309, %v269
  %v311 = vadd.f32 %v310, %v272
  %v312 = vadd.f32 %v311, %v277
  %v313 = vadd.f32 %v312, %v280
  %v314 = vrot.slane %v313, 4
  %v315 = vadd.f32 %v313, %v314
  %v316 = vrot.slane %v315, 2
  %v317 = vadd.f32 %v315, %v316
  %v318 = vrot.slane %v317, 1
  %v319 = vadd.f32 %v317, %v318
  %v320 = vmul.f32 %v157, %v157
  %v321 = vmul.f32 %v160, %v160
  %v322 = vmul.f32 %v165, %v165
  %v323 = vmul.f32 %v168, %v168
  %v324 = vmul.f32 %v173, %v173
  %v325 = vmul.f32 %v176, %v176
  %v326 = vmul.f32 %v181, %v181
  %v327 = vmul.f32 %v184, %v184
  %v328 = vmul.f32 %v189, %v189
  %v329 = vmul.f32 %v192, %v192
  %v330 = vmul.f32 %v197, %v197
  %v331 = vmul.f32 %v200, %v200
  %v332 = vmul.f32 %v205, %v205
  %v333 = vmul.f32 %v208, %v208
  %v334 = vmul.f32 %v213, %v213
  %v335 = vmul.f32 %v216, %v216
  %v336 = vmul.f32 %v221, %v221
  %v337 = vmul.f32 %v224, %v224
  %v338 = vmul.f32 %v229, %v229
  %v339 = vmul.f32 %v232, %v232
  %v340 = vmul.f32 %v237, %v237
  %v341 = vmul.f32 %v240, %v240
  %v342 = vmul.f32 %v245, %v245
  %v343 = vmul.f32 %v248, %v248
  %v344 = vmul.f32 %v253, %v253
  %v345 = vmul.f32 %v256, %v256
  %v346 = vmul.f32 %v261, %v261
  %v347 = vmul.f32 %v264, %v264
  %v348 = vmul.f32 %v269, %v269
  %v349 = vmul.f32 %v272, %v272
  %v350 = vmul.f32 %v277, %v277
  %v351 = vmul.f32 %v280, %v280
  %v352 = vadd.f32 %v320, %v321
  %v353 = vadd.f32 %v352, %v322
  %v354 = vadd.f32 %v353, %v323
  %v355 = vadd.f32 %v354, %v324
  %v356 = vadd.f32 %v355, %v325
  %v357 = vadd.f32 %v356, %v326
  %v358 = vadd.f32 %v357, %v327
  %v359 = vadd.f32 %v358, %v328
  %v360 = vadd.f32 %v359, %v329
  %v361 = vadd.f32 %v360, %v330
  %v362 = vadd.f32 %v361, %v331
  %v363 = vadd.f32 %v362, %v332
  %v364 = vadd.f32 %v363, %v333
  %v365 = vadd.f32 %v364, %v334
  %v366 = vadd.f32 %v365, %v335
  %v367 = vadd.f32 %v366, %v336
  %v368 = vadd.f32 %v367, %v337
  %v369 = vadd.f32 %v368, %v338
  %v370 = vadd.f32 %v369, %v339
  %v371 = vadd.f32 %v370, %v340
  %v372 = vadd.f32 %v371, %v341
  %v373 = vadd.f32 %v372, %v342
  %v374 = vadd.f32 %v373, %v343
  %v375 = vadd.f32 %v374, %v344
  %v376 = vadd.f32 %v375, %v345
  %v377 = vadd.f32 %v376, %v346
  %v378 = vadd.f32 %v377, %v347
  %v379 = vadd.f32 %v378, %v348
  %v380 = vadd.f32 %v379, %v349
  %v381 = vadd.f32 %v380, %v350
  %v382 = vadd.f32 %v381, %v351
  %v383 = vrot.slane %v382, 4
  %v384 = vadd.f32 %v382, %v383
  %v385 = vrot.slane %v384, 2
  %v386 = vadd.f32 %v384, %v385
  %v387 = vrot.slane %v386, 1
  %v388 = vadd.f32 %v386, %v387
  %v389 = vld [vmem:[%s2] sm:$0x3]
  %vm390 = vcmask 1040384
  %v391 = vsel %vm390, %v319, %v388
  %v392 = vadd.f32 %v389, %v391
  %393 = vst [vmem:[%s2] sm:$0x3] %v392
  // Predicated region
  $region14: #{nn_forward.2} parent=0 // pred_check
    _
  $region15: #{nn_forward.2} parent=0 // pred_check_branch
    %395 = sbr.rel (0) target = $region17
  $region16: #{nn_forward.2} parent=0 // pred_region
    _
  $region17: #{nn_forward.2} parent=0 // pred_fallthru
    _
  // Predicated region
  $region18: #{nn_forward.2} parent=0 // pred_check
    _
  $region19: #{nn_forward.2} parent=0 // pred_check_branch
    %397 = sbr.rel (0) target = $region21
  $region20: #{nn_forward.2} parent=0 // pred_region
    _
  $region21: #{nn_forward.2} parent=0 // pred_fallthru
    _

// kernel: nn_forward.3
$region0: #{nn_forward.3}
  #allocation0 [shape = 'u32[]', space=smem, size = 0x4, offset = 0x4, fixed_abs, tag = 'smem constant byte address 0x4 - core index']
  #allocation1 [shape = 'u32[144,128]{1,0:T(1,128)}', space=vmem, size = 0x12000, scoped, tag = 'internal scratch']
  %s0 = inlined_call_operand.vmem [shape: f32[256,16], index: 0, kind: input, shape index: {}]
  %s1 = inlined_call_operand.vmem [shape: bf16[16,128], index: 1, kind: input, shape index: {}]
  %s2 = inlined_call_operand.vmem [shape: bf16[128,128], index: 2, kind: input, shape index: {}]
  %s3 = inlined_call_operand.vmem [shape: f32[3,128], index: 3, kind: input, shape index: {}]
  %s4 = inlined_call_operand.vmem [shape: f32[256,128], index: 4, kind: output, shape index: {}]
  %s5 = sld [smem:[#allocation0]]
  $region26: #{nn_forward.3} parent=0
    _
  %s7 = ssub.s32 1, %s5
  %s8 = scalar_select 0, %s7, %s5
  // Predicated region
  $region2: #{nn_forward.3} parent=0 // pred_check
    _
  $region3: #{nn_forward.3} parent=0 // pred_check_branch
    %10 = sbr.rel (0) target = $region5
  $region4: #{nn_forward.3} parent=0 // pred_region
    _
  $region5: #{nn_forward.3} parent=0 // pred_fallthru
    _
  // Predicated region
  $region6: #{nn_forward.3} parent=0 // pred_check
    _
  $region7: #{nn_forward.3} parent=0 // pred_check_branch
    %12 = sbr.rel (0) target = $region9
  $region8: #{nn_forward.3} parent=0 // pred_region
    _
  $region9: #{nn_forward.3} parent=0 // pred_fallthru
    _
  // Predicated region
  $region10: #{nn_forward.3} parent=0 // pred_check
    _
  $region11: #{nn_forward.3} parent=0 // pred_check_branch
    %14 = sbr.rel (0) target = $region13
  $region12: #{nn_forward.3} parent=0 // pred_region
    _
  $region13: #{nn_forward.3} parent=0 // pred_fallthru
    _
  // Predicated region
  $region14: #{nn_forward.3} parent=0 // pred_check
    _
  $region15: #{nn_forward.3} parent=0 // pred_check_branch
    %16 = sbr.rel (0) target = $region17
  $region16: #{nn_forward.3} parent=0 // pred_region
    _
  $region17: #{nn_forward.3} parent=0 // pred_fallthru
    _
  %v18 = vld [vmem:[%s0] sm:$0xff]
  %v19 = vld [vmem:[%s0 + $0x8] sm:$0xff]
  %v20 = vld [vmem:[%s0 + $0x10] sm:$0xff]
  %v21 = vld [vmem:[%s0 + $0x18] sm:$0xff]
  %v22 = vld [vmem:[%s0 + $0x20] sm:$0xff]
  %v23 = vld [vmem:[%s0 + $0x28] sm:$0xff]
  %v24 = vld [vmem:[%s0 + $0x30] sm:$0xff]
  %v25 = vld [vmem:[%s0 + $0x38] sm:$0xff]
  %v26 = vld [vmem:[%s0 + $0x40] sm:$0xff]
  %v27 = vld [vmem:[%s0 + $0x48] sm:$0xff]
  %v28 = vld [vmem:[%s0 + $0x50] sm:$0xff]
  %v29 = vld [vmem:[%s0 + $0x58] sm:$0xff]
  %v30 = vld [vmem:[%s0 + $0x60] sm:$0xff]
  %v31 = vld [vmem:[%s0 + $0x68] sm:$0xff]
  %v32 = vld [vmem:[%s0 + $0x70] sm:$0xff]
  %v33 = vld [vmem:[%s0 + $0x78] sm:$0xff]
  %v34 = vld [vmem:[%s0 + $0x80] sm:$0xff]
  %v35 = vld [vmem:[%s0 + $0x88] sm:$0xff]
  %v36 = vld [vmem:[%s0 + $0x90] sm:$0xff]
  %v37 = vld [vmem:[%s0 + $0x98] sm:$0xff]
  %v38 = vld [vmem:[%s0 + $0xa0] sm:$0xff]
  %v39 = vld [vmem:[%s0 + $0xa8] sm:$0xff]
  %v40 = vld [vmem:[%s0 + $0xb0] sm:$0xff]
  %v41 = vld [vmem:[%s0 + $0xb8] sm:$0xff]
  %v42 = vld [vmem:[%s0 + $0xc0] sm:$0xff]
  %v43 = vld [vmem:[%s0 + $0xc8] sm:$0xff]
  %v44 = vld [vmem:[%s0 + $0xd0] sm:$0xff]
  %v45 = vld [vmem:[%s0 + $0xd8] sm:$0xff]
  %v46 = vld [vmem:[%s0 + $0xe0] sm:$0xff]
  %v47 = vld [vmem:[%s0 + $0xe8] sm:$0xff]
  %v48 = vld [vmem:[%s0 + $0xf0] sm:$0xff]
  %v49 = vld [vmem:[%s0 + $0xf8] sm:$0xff]
  %v50 = vpack.c.bf16 %v19, %v18
  %v51 = vpack.c.bf16 %v21, %v20
  %v52 = vpack.c.bf16 %v23, %v22
  %v53 = vpack.c.bf16 %v25, %v24
  %v54 = vpack.c.bf16 %v27, %v26
  %v55 = vpack.c.bf16 %v29, %v28
  %v56 = vpack.c.bf16 %v31, %v30
  %v57 = vpack.c.bf16 %v33, %v32
  %v58 = vpack.c.bf16 %v35, %v34
  %v59 = vpack.c.bf16 %v37, %v36
  %v60 = vpack.c.bf16 %v39, %v38
  %v61 = vpack.c.bf16 %v41, %v40
  %v62 = vpack.c.bf16 %v43, %v42
  %v63 = vpack.c.bf16 %v45, %v44
  %v64 = vpack.c.bf16 %v47, %v46
  %v65 = vpack.c.bf16 %v49, %v48
  %v66 = vld [vmem:[%s1] sm:$0xf]
  %v67 = vld [vmem:[%s1 + $0x4] sm:$0xf]
  %v70 = vunpack.c.l.b16 %v66
  %v71 = vunpack.c.l.b16 %v67
  %v72 = vpack.c.b16 %v71, %v70
  %vm74 = vcmask 130048
  %v76 = vsel %vm74, %v50, 0
  %v79 = vsel %vm74, %v51, 0
  %v82 = vsel %vm74, %v52, 0
  %v85 = vsel %vm74, %v53, 0
  %v88 = vsel %vm74, %v54, 0
  %v91 = vsel %vm74, %v55, 0
  %v94 = vsel %vm74, %v56, 0
  %v97 = vsel %vm74, %v57, 0
  %v100 = vsel %vm74, %v58, 0
  %v103 = vsel %vm74, %v59, 0
  %v106 = vsel %vm74, %v60, 0
  %v109 = vsel %vm74, %v61, 0
  %v112 = vsel %vm74, %v62, 0
  %v115 = vsel %vm74, %v63, 0
  %v118 = vsel %vm74, %v64, 0
  %v121 = vsel %vm74, %v65, 0
  %123 = vmatprep.subr.bf16.mxu0 0
  %124 = vmatpush1.bf16.msra.mxu0 %v72
  %125 = vmatprep.subr.bf16.mxu0 0
  %126 = vmatpush1.bf16.msra.mxu0 0
  %127 = vmatprep.subr.bf16.mxu0 0
  %128 = vmatpush1.bf16.msra.mxu0 0
  %129 = vmatprep.subr.bf16.mxu0 0
  %130 = vmatpush1.bf16.msra.mxu0 0
  %131 = vmatprep.subr.bf16.mxu0 0
  %132 = vmatpush1.bf16.msra.mxu0 0
  %133 = vmatprep.subr.bf16.mxu0 0
  %134 = vmatpush1.bf16.msra.mxu0 0
  %135 = vmatprep.subr.bf16.mxu0 0
  %136 = vmatpush1.bf16.msra.mxu0 0
  %137 = vmatprep.subr.bf16.mxu0 0
  %138 = vmatpush1.bf16.msra.mxu0 0
  %139 = vmatprep.subr.bf16.mxu0 0
  %140 = vmatpush1.bf16.msra.mxu0 0
  %141 = vmatprep.subr.bf16.mxu0 0
  %142 = vmatpush1.bf16.msra.mxu0 0
  %143 = vmatprep.subr.bf16.mxu0 0
  %144 = vmatpush1.bf16.msra.mxu0 0
  %145 = vmatprep.subr.bf16.mxu0 0
  %146 = vmatpush1.bf16.msra.mxu0 0
  %147 = vmatprep.subr.bf16.mxu0 0
  %148 = vmatpush1.bf16.msra.mxu0 0
  %149 = vmatprep.subr.bf16.mxu0 0
  %150 = vmatpush1.bf16.msra.mxu0 0
  %151 = vmatprep.subr.bf16.mxu0 0
  %152 = vmatpush1.bf16.msra.mxu0 0
  %153 = vmatprep.subr.bf16.mxu0 0
  %154 = vmatpush1.bf16.msra.mxu0 0
  %155 = vmatprep.mubr.bf16.mxu0 0
  %156 = vmatmul.mubr.bf16.gmra.mrb[0].mxu0 %v76
  %v157 = vpop.f32.mrb[0].mxu0
  %v158 = vadd.f32 0.0, %v157
  %v159 = vpop.f32.mrb[0].mxu0
  %v160 = vpop.f32.mrb[0].mxu0
  %v161 = vadd.f32 0.0, %v160
  %v162 = vpop.f32.mrb[0].mxu0
  %163 = vmatprep.mubr.bf16.mxu0 0
  %164 = vmatmul.mubr.bf16.gmra.mrb[0].mxu0 %v79
  %v165 = vpop.f32.mrb[0].mxu0
  %v166 = vadd.f32 0.0, %v165
  %v167 = vpop.f32.mrb[0].mxu0
  %v168 = vpop.f32.mrb[0].mxu0
  %v169 = vadd.f32 0.0, %v168
  %v170 = vpop.f32.mrb[0].mxu0
  %171 = vmatprep.mubr.bf16.mxu0 0
  %172 = vmatmul.mubr.bf16.gmra.mrb[0].mxu0 %v82
  %v173 = vpop.f32.mrb[0].mxu0
  %v174 = vadd.f32 0.0, %v173
  %v175 = vpop.f32.mrb[0].mxu0
  %v176 = vpop.f32.mrb[0].mxu0
  %v177 = vadd.f32 0.0, %v176
  %v178 = vpop.f32.mrb[0].mxu0
  %179 = vmatprep.mubr.bf16.mxu0 0
  %180 = vmatmul.mubr.bf16.gmra.mrb[0].mxu0 %v85
  %v181 = vpop.f32.mrb[0].mxu0
  %v182 = vadd.f32 0.0, %v181
  %v183 = vpop.f32.mrb[0].mxu0
  %v184 = vpop.f32.mrb[0].mxu0
  %v185 = vadd.f32 0.0, %v184
  %v186 = vpop.f32.mrb[0].mxu0
  %187 = vmatprep.mubr.bf16.mxu0 0
  %188 = vmatmul.mubr.bf16.gmra.mrb[0].mxu0 %v88
  %v189 = vpop.f32.mrb[0].mxu0
  %v190 = vadd.f32 0.0, %v189
  %v191 = vpop.f32.mrb[0].mxu0
  %v192 = vpop.f32.mrb[0].mxu0
  %v193 = vadd.f32 0.0, %v192
  %v194 = vpop.f32.mrb[0].mxu0
  %195 = vmatprep.mubr.bf16.mxu0 0
  %196 = vmatmul.mubr.bf16.gmra.mrb[0].mxu0 %v91
  %v197 = vpop.f32.mrb[0].mxu0
  %v198 = vadd.f32 0.0, %v197
  %v199 = vpop.f32.mrb[0].mxu0
  %v200 = vpop.f32.mrb[0].mxu0
  %v201 = vadd.f32 0.0, %v200
  %v202 = vpop.f32.mrb[0].mxu0
  %203 = vmatprep.mubr.bf16.mxu0 0
  %204 = vmatmul.mubr.bf16.gmra.mrb[0].mxu0 %v94
  %v205 = vpop.f32.mrb[0].mxu0
  %v206 = vadd.f32 0.0, %v205
  %v207 = vpop.f32.mrb[0].mxu0
  %v208 = vpop.f32.mrb[0].mxu0
  %v209 = vadd.f32 0.0, %v208
  %v210 = vpop.f32.mrb[0].mxu0
  %211 = vmatprep.mubr.bf16.mxu0 0
  %212 = vmatmul.mubr.bf16.gmra.mrb[0].mxu0 %v97
  %v213 = vpop.f32.mrb[0].mxu0
  %v214 = vadd.f32 0.0, %v213
  %v215 = vpop.f32.mrb[0].mxu0
  %v216 = vpop.f32.mrb[0].mxu0
  %v217 = vadd.f32 0.0, %v216
  %v218 = vpop.f32.mrb[0].mxu0
  %219 = vmatprep.mubr.bf16.mxu0 0
  %220 = vmatmul.mubr.bf16.gmra.mrb[0].mxu0 %v100
  %v221 = vpop.f32.mrb[0].mxu0
  %v222 = vadd.f32 0.0, %v221
  %v223 = vpop.f32.mrb[0].mxu0
  %v224 = vpop.f32.mrb[0].mxu0
  %v225 = vadd.f32 0.0, %v224
  %v226 = vpop.f32.mrb[0].mxu0
  %227 = vmatprep.mubr.bf16.mxu0 0
  %228 = vmatmul.mubr.bf16.gmra.mrb[0].mxu0 %v103
  %v229 = vpop.f32.mrb[0].mxu0
  %v230 = vadd.f32 0.0, %v229
  %v231 = vpop.f32.mrb[0].mxu0
  %v232 = vpop.f32.mrb[0].mxu0
  %v233 = vadd.f32 0.0, %v232
  %v234 = vpop.f32.mrb[0].mxu0
  %235 = vmatprep.mubr.bf16.mxu0 0
  %236 = vmatmul.mubr.bf16.gmra.mrb[0].mxu0 %v106
  %v237 = vpop.f32.mrb[0].mxu0
  %v238 = vadd.f32 0.0, %v237
  %v239 = vpop.f32.mrb[0].mxu0
  %v240 = vpop.f32.mrb[0].mxu0
  %v241 = vadd.f32 0.0, %v240
  %v242 = vpop.f32.mrb[0].mxu0
  %243 = vmatprep.mubr.bf16.mxu0 0
  %244 = vmatmul.mubr.bf16.gmra.mrb[0].mxu0 %v109
  %v245 = vpop.f32.mrb[0].mxu0
  %v246 = vadd.f32 0.0, %v245
  %v247 = vpop.f32.mrb[0].mxu0
  %v248 = vpop.f32.mrb[0].mxu0
  %v249 = vadd.f32 0.0, %v248
  %v250 = vpop.f32.mrb[0].mxu0
  %251 = vmatprep.mubr.bf16.mxu0 0
  %252 = vmatmul.mubr.bf16.gmra.mrb[0].mxu0 %v112
  %v253 = vpop.f32.mrb[0].mxu0
  %v254 = vadd.f32 0.0, %v253
  %v255 = vpop.f32.mrb[0].mxu0
  %v256 = vpop.f32.mrb[0].mxu0
  %v257 = vadd.f32 0.0, %v256
  %v258 = vpop.f32.mrb[0].mxu0
  %259 = vmatprep.mubr.bf16.mxu0 0
  %260 = vmatmul.mubr.bf16.gmra.mrb[0].mxu0 %v115
  %v261 = vpop.f32.mrb[0].mxu0
  %v262 = vadd.f32 0.0, %v261
  %v263 = vpop.f32.mrb[0].mxu0
  %v264 = vpop.f32.mrb[0].mxu0
  %v265 = vadd.f32 0.0, %v264
  %v266 = vpop.f32.mrb[0].mxu0
  %267 = vmatprep.mubr.bf16.mxu0 0
  %268 = vmatmul.mubr.bf16.gmra.mrb[0].mxu0 %v118
  %v269 = vpop.f32.mrb[0].mxu0
  %v270 = vadd.f32 0.0, %v269
  %v271 = vpop.f32.mrb[0].mxu0
  %v272 = vpop.f32.mrb[0].mxu0
  %v273 = vadd.f32 0.0, %v272
  %v274 = vpop.f32.mrb[0].mxu0
  %275 = vmatprep.mubr.bf16.mxu0 0
  %276 = vmatmul.mubr.bf16.gmra.mrb[0].mxu0 %v121
  %v277 = vpop.f32.mrb[0].mxu0
  %v278 = vadd.f32 0.0, %v277
  %v279 = vpop.f32.mrb[0].mxu0
  %v280 = vpop.f32.mrb[0].mxu0
  %v281 = vadd.f32 0.0, %v280
  %v282 = vpop.f32.mrb[0].mxu0
  %283 = vdwg.mxu0
  %v284 = vld [vmem:[%s3] sm:$0x1]
  %v285 = vld [vmem:[%s3 + $0x1] sm:$0x1]
  %v286 = vld [vmem:[%s3 + $0x2] sm:$0x1]
  %v287 = vlaneseq
  %v288 = vshrl.u32 %v287, 7
  %v289 = vsub.s32 0, %v288
  %v290 = vrot.slane %v284, %v289
  %v291 = vmul.f32 %v158, %v290
  %v292 = vmul.f32 %v161, %v290
  %v293 = vmul.f32 %v166, %v290
  %v294 = vmul.f32 %v169, %v290
  %v295 = vmul.f32 %v174, %v290
  %v296 = vmul.f32 %v177, %v290
  %v297 = vmul.f32 %v182, %v290
  %v298 = vmul.f32 %v185, %v290
  %v299 = vmul.f32 %v190, %v290
  %v300 = vmul.f32 %v193, %v290
  %v301 = vmul.f32 %v198, %v290
  %v302 = vmul.f32 %v201, %v290
  %v303 = vmul.f32 %v206, %v290
  %v304 = vmul.f32 %v209, %v290
  %v305 = vmul.f32 %v214, %v290
  %v306 = vmul.f32 %v217, %v290
  %v307 = vmul.f32 %v222, %v290
  %v308 = vmul.f32 %v225, %v290
  %v309 = vmul.f32 %v230, %v290
  %v310 = vmul.f32 %v233, %v290
  %v311 = vmul.f32 %v238, %v290
  %v312 = vmul.f32 %v241, %v290
  %v313 = vmul.f32 %v246, %v290
  %v314 = vmul.f32 %v249, %v290
  %v315 = vmul.f32 %v254, %v290
  %v316 = vmul.f32 %v257, %v290
  %v317 = vmul.f32 %v262, %v290
  %v318 = vmul.f32 %v265, %v290
  %v319 = vmul.f32 %v270, %v290
  %v320 = vmul.f32 %v273, %v290
  %v321 = vmul.f32 %v278, %v290
  %v322 = vmul.f32 %v281, %v290
  %v323 = vlaneseq
  %v324 = vshrl.u32 %v323, 7
  %v325 = vsub.s32 0, %v324
  %v326 = vrot.slane %v285, %v325
  %v327 = vadd.f32 %v291, %v326
  %v328 = vadd.f32 %v292, %v326
  %v329 = vadd.f32 %v293, %v326
  %v330 = vadd.f32 %v294, %v326
  %v331 = vadd.f32 %v295, %v326
  %v332 = vadd.f32 %v296, %v326
  %v333 = vadd.f32 %v297, %v326
  %v334 = vadd.f32 %v298, %v326
  %v335 = vadd.f32 %v299, %v326
  %v336 = vadd.f32 %v300, %v326
  %v337 = vadd.f32 %v301, %v326
  %v338 = vadd.f32 %v302, %v326
  %v339 = vadd.f32 %v303, %v326
  %v340 = vadd.f32 %v304, %v326
  %v341 = vadd.f32 %v305, %v326
  %v342 = vadd.f32 %v306, %v326
  %v343 = vadd.f32 %v307, %v326
  %v344 = vadd.f32 %v308, %v326
  %v345 = vadd.f32 %v309, %v326
  %v346 = vadd.f32 %v310, %v326
  %v347 = vadd.f32 %v311, %v326
  %v348 = vadd.f32 %v312, %v326
  %v349 = vadd.f32 %v313, %v326
  %v350 = vadd.f32 %v314, %v326
  %v351 = vadd.f32 %v315, %v326
  %v352 = vadd.f32 %v316, %v326
  %v353 = vadd.f32 %v317, %v326
  %v354 = vadd.f32 %v318, %v326
  %v355 = vadd.f32 %v319, %v326
  %v356 = vadd.f32 %v320, %v326
  %v357 = vadd.f32 %v321, %v326
  %v358 = vadd.f32 %v322, %v326
  %v359 = vmax.f32 %v327, 0.0
  %v360 = vmax.f32 %v328, 0.0
  %v361 = vmax.f32 %v329, 0.0
  %v362 = vmax.f32 %v330, 0.0
  %v363 = vmax.f32 %v331, 0.0
  %v364 = vmax.f32 %v332, 0.0
  %v365 = vmax.f32 %v333, 0.0
  %v366 = vmax.f32 %v334, 0.0
  %v367 = vmax.f32 %v335, 0.0
  %v368 = vmax.f32 %v336, 0.0
  %v369 = vmax.f32 %v337, 0.0
  %v370 = vmax.f32 %v338, 0.0
  %v371 = vmax.f32 %v339, 0.0
  %v372 = vmax.f32 %v340, 0.0
  %v373 = vmax.f32 %v341, 0.0
  %v374 = vmax.f32 %v342, 0.0
  %v375 = vmax.f32 %v343, 0.0
  %v376 = vmax.f32 %v344, 0.0
  %v377 = vmax.f32 %v345, 0.0
  %v378 = vmax.f32 %v346, 0.0
  %v379 = vmax.f32 %v347, 0.0
  %v380 = vmax.f32 %v348, 0.0
  %v381 = vmax.f32 %v349, 0.0
  %v382 = vmax.f32 %v350, 0.0
  %v383 = vmax.f32 %v351, 0.0
  %v384 = vmax.f32 %v352, 0.0
  %v385 = vmax.f32 %v353, 0.0
  %v386 = vmax.f32 %v354, 0.0
  %v387 = vmax.f32 %v355, 0.0
  %v388 = vmax.f32 %v356, 0.0
  %v389 = vmax.f32 %v357, 0.0
  %v390 = vmax.f32 %v358, 0.0
  %v391 = vpack.c.bf16 %v360, %v359
  %v392 = vpack.c.bf16 %v362, %v361
  %v393 = vpack.c.bf16 %v364, %v363
  %v394 = vpack.c.bf16 %v366, %v365
  %v395 = vpack.c.bf16 %v368, %v367
  %v396 = vpack.c.bf16 %v370, %v369
  %v397 = vpack.c.bf16 %v372, %v371
  %v398 = vpack.c.bf16 %v374, %v373
  %v399 = vpack.c.bf16 %v376, %v375
  %v400 = vpack.c.bf16 %v378, %v377
  %v401 = vpack.c.bf16 %v380, %v379
  %v402 = vpack.c.bf16 %v382, %v381
  %v403 = vpack.c.bf16 %v384, %v383
  %v404 = vpack.c.bf16 %v386, %v385
  %v405 = vpack.c.bf16 %v388, %v387
  %v406 = vpack.c.bf16 %v390, %v389
  %v407 = vld [vmem:[%s2] sm:$0xf]
  %v408 = vld [vmem:[%s2 + $0x4] sm:$0xf]
  %v409 = vld [vmem:[%s2 + $0x8] sm:$0xf]
  %v410 = vld [vmem:[%s2 + $0xc] sm:$0xf]
  %v411 = vld [vmem:[%s2 + $0x10] sm:$0xf]
  %v412 = vld [vmem:[%s2 + $0x14] sm:$0xf]
  %v413 = vld [vmem:[%s2 + $0x18] sm:$0xf]
  %v414 = vld [vmem:[%s2 + $0x1c] sm:$0xf]
  %v415 = vld [vmem:[%s2 + $0x20] sm:$0xf]
  %v416 = vld [vmem:[%s2 + $0x24] sm:$0xf]
  %v417 = vld [vmem:[%s2 + $0x28] sm:$0xf]
  %v418 = vld [vmem:[%s2 + $0x2c] sm:$0xf]
  %v419 = vld [vmem:[%s2 + $0x30] sm:$0xf]
  %v420 = vld [vmem:[%s2 + $0x34] sm:$0xf]
  %v421 = vld [vmem:[%s2 + $0x38] sm:$0xf]
  %v422 = vld [vmem:[%s2 + $0x3c] sm:$0xf]
  %v423 = vlaneseq
  %v424 = vshrl.u32 %v423, 7
  %v425 = vsub.s32 0, %v424
  %v426 = vrot.slane %v286, %v425
  %v443 = vunpack.c.l.b16 %v407
  %v444 = vunpack.c.l.b16 %v408
  %v445 = vunpack.c.l.b16 %v409
  %v446 = vunpack.c.l.b16 %v410
  %v447 = vunpack.c.l.b16 %v411
  %v448 = vunpack.c.l.b16 %v412
  %v449 = vunpack.c.l.b16 %v413
  %v450 = vunpack.c.l.b16 %v414
  %v451 = vunpack.c.l.b16 %v415
  %v452 = vunpack.c.l.b16 %v416
  %v453 = vunpack.c.l.b16 %v417
  %v454 = vunpack.c.l.b16 %v418
  %v455 = vunpack.c.l.b16 %v419
  %v456 = vunpack.c.l.b16 %v420
  %v457 = vunpack.c.l.b16 %v421
  %v458 = vunpack.c.l.b16 %v422
  %v459 = vpack.c.b16 %v444, %v443
  %v460 = vpack.c.b16 %v446, %v445
  %v461 = vpack.c.b16 %v448, %v447
  %v462 = vpack.c.b16 %v450, %v449
  %v463 = vpack.c.b16 %v452, %v451
  %v464 = vpack.c.b16 %v454, %v453
  %v465 = vpack.c.b16 %v456, %v455
  %v466 = vpack.c.b16 %v458, %v457
  %475 = vmatprep.subr.bf16.mxu0 0
  %476 = vmatpush1.bf16.msra.mxu0 %v459
  %477 = vmatprep.subr.bf16.mxu0 0
  %478 = vmatpush1.bf16.msra.mxu0 %v460
  %479 = vmatprep.subr.bf16.mxu0 0
  %480 = vmatpush1.bf16.msra.mxu0 %v461
  %481 = vmatprep.subr.bf16.mxu0 0
  %482 = vmatpush1.bf16.msra.mxu0 %v462
  %483 = vmatprep.subr.bf16.mxu0 0
  %484 = vmatpush1.bf16.msra.mxu0 %v463
  %485 = vmatprep.subr.bf16.mxu0 0
  %486 = vmatpush1.bf16.msra.mxu0 %v464
  %487 = vmatprep.subr.bf16.mxu0 0
  %488 = vmatpush1.bf16.msra.mxu0 %v465
  %489 = vmatprep.subr.bf16.mxu0 0
  %490 = vmatpush1.bf16.msra.mxu0 %v466
  %491 = vmatprep.subr.bf16.mxu0 0
  %492 = vmatpush1.bf16.msra.mxu0 0
  %493 = vmatprep.subr.bf16.mxu0 0
  %494 = vmatpush1.bf16.msra.mxu0 0
  %495 = vmatprep.subr.bf16.mxu0 0
  %496 = vmatpush1.bf16.msra.mxu0 0
  %497 = vmatprep.subr.bf16.mxu0 0
  %498 = vmatpush1.bf16.msra.mxu0 0
  %499 = vmatprep.subr.bf16.mxu0 0
  %500 = vmatpush1.bf16.msra.mxu0 0
  %501 = vmatprep.subr.bf16.mxu0 0
  %502 = vmatpush1.bf16.msra.mxu0 0
  %503 = vmatprep.subr.bf16.mxu0 0
  %504 = vmatpush1.bf16.msra.mxu0 0
  %505 = vmatprep.subr.bf16.mxu0 0
  %506 = vmatpush1.bf16.msra.mxu0 0
  %507 = vmatprep.mubr.bf16.mxu0 0
  %508 = vmatmul.mubr.bf16.gmra.mrb[0].mxu0 %v391
  %v509 = vpop.f32.mrb[0].mxu0
  %v510 = vadd.f32 %v426, %v509
  %v511 = vpop.f32.mrb[0].mxu0
  %v512 = vpop.f32.mrb[0].mxu0
  %v513 = vadd.f32 %v426, %v512
  %v514 = vpop.f32.mrb[0].mxu0
  %515 = vmatprep.mubr.bf16.mxu0 0
  %516 = vmatmul.mubr.bf16.gmra.mrb[0].mxu0 %v392
  %v517 = vpop.f32.mrb[0].mxu0
  %v518 = vadd.f32 %v426, %v517
  %v519 = vpop.f32.mrb[0].mxu0
  %v520 = vpop.f32.mrb[0].mxu0
  %v521 = vadd.f32 %v426, %v520
  %v522 = vpop.f32.mrb[0].mxu0
  %523 = vmatprep.mubr.bf16.mxu0 0
  %524 = vmatmul.mubr.bf16.gmra.mrb[0].mxu0 %v393
  %v525 = vpop.f32.mrb[0].mxu0
  %v526 = vadd.f32 %v426, %v525
  %v527 = vpop.f32.mrb[0].mxu0
  %v528 = vpop.f32.mrb[0].mxu0
  %v529 = vadd.f32 %v426, %v528
  %v530 = vpop.f32.mrb[0].mxu0
  %531 = vmatprep.mubr.bf16.mxu0 0
  %532 = vmatmul.mubr.bf16.gmra.mrb[0].mxu0 %v394
  %v533 = vpop.f32.mrb[0].mxu0
  %v534 = vadd.f32 %v426, %v533
  %v535 = vpop.f32.mrb[0].mxu0
  %v536 = vpop.f32.mrb[0].mxu0
  %v537 = vadd.f32 %v426, %v536
  %v538 = vpop.f32.mrb[0].mxu0
  %539 = vmatprep.mubr.bf16.mxu0 0
  %540 = vmatmul.mubr.bf16.gmra.mrb[0].mxu0 %v395
  %v541 = vpop.f32.mrb[0].mxu0
  %v542 = vadd.f32 %v426, %v541
  %v543 = vpop.f32.mrb[0].mxu0
  %v544 = vpop.f32.mrb[0].mxu0
  %v545 = vadd.f32 %v426, %v544
  %v546 = vpop.f32.mrb[0].mxu0
  %547 = vmatprep.mubr.bf16.mxu0 0
  %548 = vmatmul.mubr.bf16.gmra.mrb[0].mxu0 %v396
  %v549 = vpop.f32.mrb[0].mxu0
  %v550 = vadd.f32 %v426, %v549
  %v551 = vpop.f32.mrb[0].mxu0
  %v552 = vpop.f32.mrb[0].mxu0
  %v553 = vadd.f32 %v426, %v552
  %v554 = vpop.f32.mrb[0].mxu0
  %555 = vmatprep.mubr.bf16.mxu0 0
  %556 = vmatmul.mubr.bf16.gmra.mrb[0].mxu0 %v397
  %v557 = vpop.f32.mrb[0].mxu0
  %v558 = vadd.f32 %v426, %v557
  %v559 = vpop.f32.mrb[0].mxu0
  %v560 = vpop.f32.mrb[0].mxu0
  %v561 = vadd.f32 %v426, %v560
  %v562 = vpop.f32.mrb[0].mxu0
  %563 = vmatprep.mubr.bf16.mxu0 0
  %564 = vmatmul.mubr.bf16.gmra.mrb[0].mxu0 %v398
  %v565 = vpop.f32.mrb[0].mxu0
  %v566 = vadd.f32 %v426, %v565
  %v567 = vpop.f32.mrb[0].mxu0
  %v568 = vpop.f32.mrb[0].mxu0
  %v569 = vadd.f32 %v426, %v568
  %v570 = vpop.f32.mrb[0].mxu0
  %571 = vmatprep.mubr.bf16.mxu0 0
  %572 = vmatmul.mubr.bf16.gmra.mrb[0].mxu0 %v399
  %v573 = vpop.f32.mrb[0].mxu0
  %v574 = vadd.f32 %v426, %v573
  %v575 = vpop.f32.mrb[0].mxu0
  %v576 = vpop.f32.mrb[0].mxu0
  %v577 = vadd.f32 %v426, %v576
  %v578 = vpop.f32.mrb[0].mxu0
  %579 = vmatprep.mubr.bf16.mxu0 0
  %580 = vmatmul.mubr.bf16.gmra.mrb[0].mxu0 %v400
  %v581 = vpop.f32.mrb[0].mxu0
  %v582 = vadd.f32 %v426, %v581
  %v583 = vpop.f32.mrb[0].mxu0
  %v584 = vpop.f32.mrb[0].mxu0
  %v585 = vadd.f32 %v426, %v584
  %v586 = vpop.f32.mrb[0].mxu0
  %587 = vmatprep.mubr.bf16.mxu0 0
  %588 = vmatmul.mubr.bf16.gmra.mrb[0].mxu0 %v401
  %v589 = vpop.f32.mrb[0].mxu0
  %v590 = vadd.f32 %v426, %v589
  %v591 = vpop.f32.mrb[0].mxu0
  %v592 = vpop.f32.mrb[0].mxu0
  %v593 = vadd.f32 %v426, %v592
  %v594 = vpop.f32.mrb[0].mxu0
  %595 = vmatprep.mubr.bf16.mxu0 0
  %596 = vmatmul.mubr.bf16.gmra.mrb[0].mxu0 %v402
  %v597 = vpop.f32.mrb[0].mxu0
  %v598 = vadd.f32 %v426, %v597
  %v599 = vpop.f32.mrb[0].mxu0
  %v600 = vpop.f32.mrb[0].mxu0
  %v601 = vadd.f32 %v426, %v600
  %v602 = vpop.f32.mrb[0].mxu0
  %603 = vmatprep.mubr.bf16.mxu0 0
  %604 = vmatmul.mubr.bf16.gmra.mrb[0].mxu0 %v403
  %v605 = vpop.f32.mrb[0].mxu0
  %v606 = vadd.f32 %v426, %v605
  %v607 = vpop.f32.mrb[0].mxu0
  %v608 = vpop.f32.mrb[0].mxu0
  %v609 = vadd.f32 %v426, %v608
  %v610 = vpop.f32.mrb[0].mxu0
  %611 = vmatprep.mubr.bf16.mxu0 0
  %612 = vmatmul.mubr.bf16.gmra.mrb[0].mxu0 %v404
  %v613 = vpop.f32.mrb[0].mxu0
  %v614 = vadd.f32 %v426, %v613
  %v615 = vpop.f32.mrb[0].mxu0
  %v616 = vpop.f32.mrb[0].mxu0
  %v617 = vadd.f32 %v426, %v616
  %v618 = vpop.f32.mrb[0].mxu0
  %619 = vmatprep.mubr.bf16.mxu0 0
  %620 = vmatmul.mubr.bf16.gmra.mrb[0].mxu0 %v405
  %v621 = vpop.f32.mrb[0].mxu0
  %v622 = vadd.f32 %v426, %v621
  %v623 = vpop.f32.mrb[0].mxu0
  %v624 = vpop.f32.mrb[0].mxu0
  %v625 = vadd.f32 %v426, %v624
  %v626 = vpop.f32.mrb[0].mxu0
  %627 = vmatprep.mubr.bf16.mxu0 0
  %628 = vmatmul.mubr.bf16.gmra.mrb[0].mxu0 %v406
  %v629 = vpop.f32.mrb[0].mxu0
  %v630 = vadd.f32 %v426, %v629
  %v631 = vpop.f32.mrb[0].mxu0
  %v632 = vpop.f32.mrb[0].mxu0
  %v633 = vadd.f32 %v426, %v632
  %v634 = vpop.f32.mrb[0].mxu0
  %635 = vdwg.mxu0
  %v636 = vmax.f32 %v510, 0.0
  %v637 = vmax.f32 %v513, 0.0
  %v638 = vmax.f32 %v518, 0.0
  %v639 = vmax.f32 %v521, 0.0
  %v640 = vmax.f32 %v526, 0.0
  %v641 = vmax.f32 %v529, 0.0
  %v642 = vmax.f32 %v534, 0.0
  %v643 = vmax.f32 %v537, 0.0
  %v644 = vmax.f32 %v542, 0.0
  %v645 = vmax.f32 %v545, 0.0
  %v646 = vmax.f32 %v550, 0.0
  %v647 = vmax.f32 %v553, 0.0
  %v648 = vmax.f32 %v558, 0.0
  %v649 = vmax.f32 %v561, 0.0
  %v650 = vmax.f32 %v566, 0.0
  %v651 = vmax.f32 %v569, 0.0
  %v652 = vmax.f32 %v574, 0.0
  %v653 = vmax.f32 %v577, 0.0
  %v654 = vmax.f32 %v582, 0.0
  %v655 = vmax.f32 %v585, 0.0
  %v656 = vmax.f32 %v590, 0.0
  %v657 = vmax.f32 %v593, 0.0
  %v658 = vmax.f32 %v598, 0.0
  %v659 = vmax.f32 %v601, 0.0
  %v660 = vmax.f32 %v606, 0.0
  %v661 = vmax.f32 %v609, 0.0
  %v662 = vmax.f32 %v614, 0.0
  %v663 = vmax.f32 %v617, 0.0
  %v664 = vmax.f32 %v622, 0.0
  %v665 = vmax.f32 %v625, 0.0
  %v666 = vmax.f32 %v630, 0.0
  %v667 = vmax.f32 %v633, 0.0
  %668 = vst [vmem:[%s4] sm:$0xff] %v636
  %669 = vst [vmem:[%s4 + $0x8] sm:$0xff] %v637
  %670 = vst [vmem:[%s4 + $0x10] sm:$0xff] %v638
  %671 = vst [vmem:[%s4 + $0x18] sm:$0xff] %v639
  %672 = vst [vmem:[%s4 + $0x20] sm:$0xff] %v640
  %673 = vst [vmem:[%s4 + $0x28] sm:$0xff] %v641
  %674 = vst [vmem:[%s4 + $0x30] sm:$0xff] %v642
  %675 = vst [vmem:[%s4 + $0x38] sm:$0xff] %v643
  %676 = vst [vmem:[%s4 + $0x40] sm:$0xff] %v644
  %677 = vst [vmem:[%s4 + $0x48] sm:$0xff] %v645
  %678 = vst [vmem:[%s4 + $0x50] sm:$0xff] %v646
  %679 = vst [vmem:[%s4 + $0x58] sm:$0xff] %v647
  %680 = vst [vmem:[%s4 + $0x60] sm:$0xff] %v648
  %681 = vst [vmem:[%s4 + $0x68] sm:$0xff] %v649
  %682 = vst [vmem:[%s4 + $0x70] sm:$0xff] %v650
  %683 = vst [vmem:[%s4 + $0x78] sm:$0xff] %v651
  %684 = vst [vmem:[%s4 + $0x80] sm:$0xff] %v652
  %685 = vst [vmem:[%s4 + $0x88] sm:$0xff] %v653
  %686 = vst [vmem:[%s4 + $0x90] sm:$0xff] %v654
  %687 = vst [vmem:[%s4 + $0x98] sm:$0xff] %v655
  %688 = vst [vmem:[%s4 + $0xa0] sm:$0xff] %v656
  %689 = vst [vmem:[%s4 + $0xa8] sm:$0xff] %v657
  %690 = vst [vmem:[%s4 + $0xb0] sm:$0xff] %v658
  %691 = vst [vmem:[%s4 + $0xb8] sm:$0xff] %v659
  %692 = vst [vmem:[%s4 + $0xc0] sm:$0xff] %v660
  %693 = vst [vmem:[%s4 + $0xc8] sm:$0xff] %v661
  %694 = vst [vmem:[%s4 + $0xd0] sm:$0xff] %v662
  %695 = vst [vmem:[%s4 + $0xd8] sm:$0xff] %v663
  %696 = vst [vmem:[%s4 + $0xe0] sm:$0xff] %v664
  %697 = vst [vmem:[%s4 + $0xe8] sm:$0xff] %v665
  %698 = vst [vmem:[%s4 + $0xf0] sm:$0xff] %v666
  %699 = vst [vmem:[%s4 + $0xf8] sm:$0xff] %v667
  // Predicated region
  $region18: #{nn_forward.3} parent=0 // pred_check
    _
  $region19: #{nn_forward.3} parent=0 // pred_check_branch
    %701 = sbr.rel (0) target = $region21
  $region20: #{nn_forward.3} parent=0 // pred_region
    _
  $region21: #{nn_forward.3} parent=0 // pred_fallthru
    _
  // Predicated region
  $region22: #{nn_forward.3} parent=0 // pred_check
    _
  $region23: #{nn_forward.3} parent=0 // pred_check_branch
    %703 = sbr.rel (0) target = $region25
  $region24: #{nn_forward.3} parent=0 // pred_region
    _
  $region25: #{nn_forward.3} parent=0 // pred_fallthru
    _

</llo_original>
